<compile_context>
chip_gen: v7x
topology: tpu7x:2x2x1
jax: 0.10.0
libtpu: 0.0.40
codegen_flags: <defaults>
</compile_context>

<pallas_src>
import numpy as np

import jax
import jax.numpy as jnp
from jax.experimental import pallas as pl
from jax.experimental.pallas import tpu as pltpu


# --------------------------------------------------------------------------
# pltpu.roll rotation-convention probe (makes the circular shift convention-proof)
# --------------------------------------------------------------------------
_ROLL_NP_CONVENTION = None


def _roll_np_convention():
    """True iff pltpu.roll follows np.roll convention (positive shift moves
    elements toward higher indices). Probed once with a tiny kernel."""
    global _ROLL_NP_CONVENTION
    if _ROLL_NP_CONVENTION is None:
        def probe(x_ref, o_ref):
            o_ref[...] = pltpu.roll(x_ref[...], 1, axis=1)

        with jax.ensure_compile_time_eval():
            x = jnp.arange(8 * 128, dtype=jnp.float32).reshape(8, 128)
            y = pl.pallas_call(
                probe, out_shape=jax.ShapeDtypeStruct((8, 128), jnp.float32))(x)
            _ROLL_NP_CONVENTION = bool(np.asarray(y)[0, 1] == 0.0)
    return _ROLL_NP_CONVENTION


def _shift_left(x, off):
    """Circular left shift along the lane axis: result[:, p] = x[:, (p + off) % L]."""
    if off == 0:
        return x
    l = x.shape[1]
    shift = (l - off) if _roll_np_convention() else off
    return pltpu.roll(x, shift, axis=1)


# --------------------------------------------------------------------------
# static helpers (run at trace time)
# --------------------------------------------------------------------------
def _pad_to(x, m=128):
    return ((x + m - 1) // m) * m


def _pos(n_batch, hp, wp, rows, cols):
    """Flattened grid positions n*hp*wp + r*wp + c for all (n, r, c), n-major."""
    nn = np.arange(n_batch)[:, None, None]
    rr = np.asarray(rows)[None, :, None]
    cc = np.asarray(cols)[None, None, :]
    return (nn * (hp * wp) + rr * wp + cc).reshape(-1)


def _regrid(n_batch, g_src, g_dst, src_rows, src_cols, dst_rows, dst_cols):
    """0/1 matrix moving values from positions of grid g_src to positions of g_dst.
    Destination lanes that are never written (padding ring, dilation holes, dead
    lanes) come out exactly zero."""
    m = np.zeros((g_src["lp"], g_dst["lp"]), np.float32)
    sp = _pos(n_batch, g_src["hp"], g_src["wp"], src_rows, src_cols)
    dp = _pos(n_batch, g_dst["hp"], g_dst["wp"], dst_rows, dst_cols)
    m[sp, dp] = 1.0
    return jnp.asarray(m)


def _conv_w_taps(w):
    """Conv2d weight (Cout, Cin, kH, kW) -> per-tap (kH*kW, Cout, Cin), bf16."""
    cout, cin, kh, kw = w.shape
    return jnp.transpose(w, (2, 3, 0, 1)).reshape(kh * kw, cout, cin).astype(jnp.bfloat16)


def _convt_w_taps(wt):
    """ConvTranspose2d weight (Cin, Cout, kH, kW) -> flipped per-tap
    (kH*kW, Cout, Cin), bf16 (equivalent stride-1 conv on the dilated grid)."""
    cin, cout, kh, kw = wt.shape
    wf = jnp.flip(wt, axis=(2, 3))
    return jnp.transpose(wf, (2, 3, 1, 0)).reshape(kh * kw, cout, cin).astype(jnp.bfloat16)


# --------------------------------------------------------------------------
# in-kernel building blocks
# --------------------------------------------------------------------------
def _conv_relu(x, w_ref, b_ref, wp, kh, kw):
    """relu(conv(x) + b) on a flattened padded grid.

    x: (Cin, L) f32 value; L is the 128-padded flattened grid n*Hp*Wp with row
    stride `wp`. w_ref: (kh*kw, Cout, Cin) bf16 taps. b_ref: (Cout, 1) f32.
    The value at lane p = n*Hp*Wp + ho*wp + wo is the conv output at (ho, wo);
    other lanes hold don't-care values that later regrid matmuls ignore.
    """
    l = x.shape[1]
    cout = w_ref.shape[1]
    acc = jnp.zeros((cout, l), jnp.float32)
    for di in range(kh):
        for dj in range(kw):
            off = di * wp + dj
            xs = _shift_left(x, off)
            acc = acc + jnp.dot(w_ref[di * kw + dj], xs.astype(jnp.bfloat16),
                                preferred_element_type=jnp.float32)
    return jnp.maximum(acc + b_ref[...], 0.0)


def _pool2x2(y, wp):
    """2x2 / stride-2 max pool; valid results land at lanes (.. + 2*hq*wp + 2*wq)."""
    m = jnp.maximum(y, _shift_left(y, 1))
    return jnp.maximum(m, _shift_left(m, wp))


def _pool3x3(y, wp):
    """3x3 / stride-1 / pad-1 max pool on a zero-embedded, non-negative grid."""
    m = jnp.maximum(y, _shift_left(y, 1))
    m = jnp.maximum(m, _shift_left(y, 2))
    out = jnp.maximum(m, _shift_left(m, wp))
    return jnp.maximum(out, _shift_left(m, 2 * wp))


# --------------------------------------------------------------------------
# fused forward pass
# --------------------------------------------------------------------------
def autoencoder_forward(x_nchw, p):
    """NCHW float32 forward of the conv autoencoder, fused into one Pallas kernel."""
    n, c_in, h, w = x_nchw.shape
    assert h % 8 == 0 and w % 8 == 0, "spatial dims must be divisible by 8"
    f32 = jnp.float32

    # ---------------- static geometry ----------------
    def mkgrid(hp, wp):
        l = n * hp * wp
        return {"hp": hp, "wp": wp, "l": l, "lp": _pad_to(l, 128)}

    g1 = mkgrid(h + 6, w + 6)                        # conv1: k7 s1 p3
    p1h, p1w = h // 2, w // 2                        # after pool1
    g2 = mkgrid(p1h + 2, p1w + 2)                    # conv2: k3 s1 p1
    p2h, p2w = p1h // 2, p1w // 2                    # after pool2
    g3 = mkgrid(p2h + 2, p2w + 2)                    # conv3: k3 s1 p1
    p3h, p3w = p2h // 2, p2w // 2                    # after pool3
    g4 = mkgrid(2 * p3h - 1 + 4, 2 * p3w - 1 + 4)    # convT1: k4 s2 p1 (pad k-1-p = 2)
    d1h, d1w = 2 * p3h, 2 * p3w
    g5 = mkgrid(d1h + 2, d1w + 2)                    # 3x3 / s1 / p1 max-pool grid
    g6 = mkgrid(2 * d1h - 1 + 2, 2 * d1w - 1 + 2)    # convT2: k2 s2 p0 (pad 1)
    d2h, d2w = 2 * d1h, 2 * d1w
    g7 = mkgrid(2 * d2h - 1 + 4, 2 * d2w - 1 + 4)    # convT3: k4 s2 p1 (pad 2)
    d3h, d3w = 2 * d2h, 2 * d2w
    assert (d3h, d3w) == (h, w)

    # ---------------- constant 0/1 regrid matrices ----------------
    ar = np.arange
    r1 = _regrid(n, g1, g2, 2 * ar(p1h), 2 * ar(p1w), 1 + ar(p1h), 1 + ar(p1w))
    r2 = _regrid(n, g2, g3, 2 * ar(p2h), 2 * ar(p2w), 1 + ar(p2h), 1 + ar(p2w))
    r3 = _regrid(n, g3, g4, 2 * ar(p3h), 2 * ar(p3w), 2 + 2 * ar(p3h), 2 + 2 * ar(p3w))
    r4 = _regrid(n, g4, g5, ar(d1h), ar(d1w), 1 + ar(d1h), 1 + ar(d1w))
    r5 = _regrid(n, g5, g6, ar(d1h), ar(d1w), 1 + 2 * ar(d1h), 1 + 2 * ar(d1w))
    r6 = _regrid(n, g6, g7, ar(d2h), ar(d2w), 2 + 2 * ar(d2h), 2 + 2 * ar(d2w))

    # ---------------- weight / bias repacking (tiny one-time ops) ----------------
    w1t, w2t, w3t = map(_conv_w_taps, (p["w1"], p["w2"], p["w3"]))
    w4t, w5t, w6t = map(_convt_w_taps, (p["wt1"], p["wt2"], p["wt3"]))
    b1 = p["b1"].reshape(-1, 1).astype(f32)
    b2 = p["b2"].reshape(-1, 1).astype(f32)
    b3 = p["b3"].reshape(-1, 1).astype(f32)
    b4 = p["bt1"].reshape(-1, 1).astype(f32)
    b5 = p["bt2"].reshape(-1, 1).astype(f32)
    b6 = p["bt3"].reshape(-1, 1).astype(f32)

    # ---------------- input: NCHW -> (C, flattened zero-padded grid) ----------------
    xg = jnp.transpose(x_nchw, (1, 0, 2, 3)).astype(f32)          # (C, N, H, W)
    xg = jnp.pad(xg, ((0, 0), (0, 0), (3, 3), (3, 3)))            # conv1 padding
    xg = xg.reshape(c_in, g1["l"])
    xg = jnp.pad(xg, ((0, 0), (0, g1["lp"] - g1["l"])))           # 128-lane align

    # ---------------- the single fused kernel ----------------
    def kernel(x_ref, w1_ref, b1_ref, w2_ref, b2_ref, w3_ref, b3_ref,
               w4_ref, b4_ref, w5_ref, b5_ref, w6_ref, b6_ref,
               r1_ref, r2_ref, r3_ref, r4_ref, r5_ref, r6_ref, o_ref):
        # encoder: conv+relu -> 2x2/2 max-pool -> regrid onto the next padded grid
        y = _conv_relu(x_ref[...], w1_ref, b1_ref, g1["wp"], 7, 7)
        y = _pool2x2(y, g1["wp"])
        y = jnp.dot(y, r1_ref[...], preferred_element_type=f32)
        y = _conv_relu(y, w2_ref, b2_ref, g2["wp"], 3, 3)
        y = _pool2x2(y, g2["wp"])
        y = jnp.dot(y, r2_ref[...], preferred_element_type=f32)
        y = _conv_relu(y, w3_ref, b3_ref, g3["wp"], 3, 3)
        y = _pool2x2(y, g3["wp"])
        y = jnp.dot(y, r3_ref[...], preferred_element_type=f32)
        # decoder: transposed convs as convs over zero-dilated grids; the regrid
        # matmuls insert dilation zeros / padding; 3x3 max-pool fused in between
        y = _conv_relu(y, w4_ref, b4_ref, g4["wp"], 4, 4)
        y = jnp.dot(y, r4_ref[...], preferred_element_type=f32)
        y = _pool3x3(y, g5["wp"])
        y = jnp.dot(y, r5_ref[...], preferred_element_type=f32)
        y = _conv_relu(y, w5_ref, b5_ref, g6["wp"], 2, 2)
        y = jnp.dot(y, r6_ref[...], preferred_element_type=f32)
        y = _conv_relu(y, w6_ref, b6_ref, g7["wp"], 4, 4)
        o_ref[...] = y

    out_grid = pl.pallas_call(
        kernel,
        out_shape=jax.ShapeDtypeStruct((c_in, g7["lp"]), f32),
    )(xg, w1t, b1, w2t, b2, w3t, b3, w4t, b4, w5t, b5, w6t, b6,
      r1, r2, r3, r4, r5, r6)

    # ---------------- output: grid -> NCHW ----------------
    out = out_grid[:, :g7["l"]].reshape(c_in, n, g7["hp"], g7["wp"])
    out = out[:, :, :d3h, :d3w]
    return jnp.transpose(out, (1, 0, 2, 3))


# --------------------------------------------------------------------------
# plain-JAX reference (for in-script verification only)
# --------------------------------------------------------------------------
def _reference_forward(x, p):
    dn = ("NCHW", "OIHW", "NCHW")

    def conv(x, w, b, pad):
        y = jax.lax.conv_general_dilated(
            x, w, window_strides=(1, 1), padding=[(pad, pad), (pad, pad)],
            dimension_numbers=dn)
        return jax.nn.relu(y + b.reshape(1, -1, 1, 1))

    def convt(x, wt, b, stride, pad):
        k = wt.shape[2]
        w = jnp.transpose(jnp.flip(wt, (2, 3)), (1, 0, 2, 3))
        y = jax.lax.conv_general_dilated(
            x, w, window_strides=(1, 1),
            padding=[(k - 1 - pad, k - 1 - pad)] * 2,
            lhs_dilation=(stride, stride), dimension_numbers=dn)
        return jax.nn.relu(y + b.reshape(1, -1, 1, 1))

    def maxpool(x, k, stride, pad):
        return jax.lax.reduce_window(
            x, -jnp.inf, jax.lax.max,
            window_dimensions=(1, 1, k, k),
            window_strides=(1, 1, stride, stride),
            padding=[(0, 0), (0, 0), (pad, pad), (pad, pad)])

    y = conv(x, p["w1"], p["b1"], 3); y = maxpool(y, 2, 2, 0)
    y = conv(y, p["w2"], p["b2"], 1); y = maxpool(y, 2, 2, 0)
    y = conv(y, p["w3"], p["b3"], 1); y = maxpool(y, 2, 2, 0)
    y = convt(y, p["wt1"], p["bt1"], 2, 1); y = maxpool(y, 3, 1, 1)
    y = convt(y, p["wt2"], p["bt2"], 2, 0)
    y = convt(y, p["wt3"], p["bt3"], 2, 1)
    return y


# --------------------------------------------------------------------------
# parameters
# --------------------------------------------------------------------------
def init_params(key, in_channel, c1, c2, c3):
    """Deterministic PyTorch-style uniform(-1/sqrt(fan_in), 1/sqrt(fan_in)) init."""
    def u(k, shape, fan_in):
        bound = 1.0 / float(fan_in) ** 0.5
        return jax.random.uniform(k, shape, jnp.float32, -bound, bound)

    ks = jax.random.split(key, 12)
    return {
        # Conv2d weights: (Cout, Cin, kH, kW)
        "w1": u(ks[0], (c1, in_channel, 7, 7), in_channel * 49),
        "b1": u(ks[1], (c1,), in_channel * 49),
        "w2": u(ks[2], (c2, c1, 3, 3), c1 * 9),
        "b2": u(ks[3], (c2,), c1 * 9),
        "w3": u(ks[4], (c3, c2, 3, 3), c2 * 9),
        "b3": u(ks[5], (c3,), c2 * 9),
        # ConvTranspose2d weights: (Cin, Cout, kH, kW)
        "wt1": u(ks[6], (c3, c2, 4, 4), c2 * 16),
        "bt1": u(ks[7], (c2,), c2 * 16),
        "wt2": u(ks[8], (c2, c1, 2, 2), c1 * 4),
        "bt2": u(ks[9], (c1,), c1 * 4),
        "wt3": u(ks[10], (c1, in_channel, 4, 4), in_channel * 16),
        "bt3": u(ks[11], (in_channel,), in_channel * 16),
    }


if __name__ == "__main__":
    in_channel, c1, c2, c3 = 4, 8, 16, 32
    n, h, w = 2, 16, 16

    key = jax.random.PRNGKey(0)
    k_x, k_p = jax.random.split(key)
    x = jax.random.normal(k_x, (n, in_channel, h, w), dtype=jnp.float32)
    params = init_params(k_p, in_channel, c1, c2, c3)

    _roll_np_convention()          # resolve rotation convention once, eagerly

    fwd = jax.jit(autoencoder_forward)
    out = jax.block_until_ready(fwd(x, params))

    assert out.shape == (n, in_channel, h, w), out.shape
    assert bool(jnp.all(jnp.isfinite(out)))

    # verify against the plain-JAX reference (bf16 MXU operands => loose tolerance)
    ref = jax.block_until_ready(jax.jit(_reference_forward)(x, params))
    np.testing.assert_allclose(np.asarray(out), np.asarray(ref), rtol=5e-2, atol=5e-2)

    print("KERNEL_OK")
</pallas_src>

<mosaic_0001>
module attributes {stable_mosaic.version = 11 : i64} {
  func.func @probe(%arg0: memref<8x128xf32, #tpu.memory_space<vmem>>, %arg1: memref<8x128xf32, #tpu.memory_space<vmem>>) attributes {dimension_semantics = [], scalar_prefetch = 0 : i64, scratch_operands = 0 : i64, tpu.core_type = #tpu.core_type<tc>} {
    %c0 = arith.constant 0 : index
    %c0_0 = arith.constant 0 : index
    %0 = vector.load %arg0[%c0, %c0_0] : memref<8x128xf32, #tpu.memory_space<vmem>>, vector<8x128xf32>
    %c1_i32 = arith.constant 1 : i32
    %1 = tpu.dynamic_rotate %0 by %c1_i32 dim 1 : vector<8x128xf32>, i32 -> vector<8x128xf32>
    %c0_1 = arith.constant 0 : index
    %c0_2 = arith.constant 0 : index
    %2 = vector.load %arg1[%c0_1, %c0_2] : memref<8x128xf32, #tpu.memory_space<vmem>>, vector<8x128xf32>
    tpu.vector_store %arg1[%c0_1, %c0_2], %1 {strides = array<i32>} : memref<8x128xf32, #tpu.memory_space<vmem>>, vector<8x128xf32>,
    return
  }
}

</mosaic_0001>

<llo_original>
// kernel: tpu_custom_call.1
$region0: #{tpu_custom_call.1}
  #allocation0 [shape = 'u32[]', space=smem, size = 0x4, offset = 0x4, fixed_abs, tag = 'smem constant byte address 0x4 - core index']
  #allocation1 [shape = 'u32[144,128]{1,0:T(1,128)}', space=vmem, size = 0x12000, scoped, tag = 'internal scratch']
  %s0 = inlined_call_operand.hbm [shape: f32[8,128], index: 0, kind: input, shape index: {}]
  %s1 = inlined_call_operand.hbm [shape: f32[8,128], index: 1, kind: output, shape index: {}]
  %s2 = sld [smem:[#allocation0]]
  $region18: #{tpu_custom_call.1} parent=0
    _
  %s4 = ssub.s32 1, %s2
  %s5 = scalar_select 0, %s4, %s2
  $region1: #{tpu_custom_call.1} parent=0
    #allocation2 [shape = 'u8[4096]{0}', space=vmem, size = 0x1000, scoped, tag = 'input window, operand 0, single buffered']
    #allocation3 [shape = 's32[1]{0}', space=sflag, size = 0x4, scoped, tag = 'scoped memory for tpu_custom_call.1']
    #allocation4 [shape = 's32[1]{0}', space=sflag, size = 0x4, scoped, tag = 'scoped memory for tpu_custom_call.1']
    #allocation5 [shape = 'u8[4096]{0}', space=vmem, size = 0x1000, scoped, tag = 'output window, operand 0, single buffered']
    %6 = vsyncpa [#allocation3], 0
    %7 = vsyncpa [#allocation4], 0
    // Predicated region
    $region2: #{tpu_custom_call.1} parent=1 // pred_check
      _
    $region3: #{tpu_custom_call.1} parent=1 // pred_check_branch
      %9 = sbr.rel (0) target = $region5
    $region4: #{tpu_custom_call.1} parent=1 // pred_region
      %s11 = ssub.s32 128, 128
      %12 = vsyncadd [#allocation3], %s11
      %s14 = sshll.u32 [#allocation2], 4
      %s15 = int_to_ptr.vmem [resolvable:$true] %s14
      %17 = dma.hbm_to_vmem [thread:$0]  %s0, 128, %s15, [#allocation3]
    $region5: #{tpu_custom_call.1} parent=1 // pred_fallthru
      _
    // Predicated region
    $region6: #{tpu_custom_call.1} parent=1 // pred_check
      _
    $region7: #{tpu_custom_call.1} parent=1 // pred_check_branch
      %19 = sbr.rel (0) target = $region9
    $region8: #{tpu_custom_call.1} parent=1 // pred_region
      %20 = dma.done [#allocation3], 128
    $region9: #{tpu_custom_call.1} parent=1 // pred_fallthru
      _
    %v21 = vld [vmem:[#allocation2] sm:$0xff]
    %22 = vrot.lane.b32.xlu0 %v21, 1
    %v23 = vpop.permute.xlu0 %22
    %24 = vst [vmem:[#allocation5] sm:$0xff] %v23
    // Predicated region
    $region10: #{tpu_custom_call.1} parent=1 // pred_check
      _
    $region11: #{tpu_custom_call.1} parent=1 // pred_check_branch
      %26 = sbr.rel (0) target = $region13
    $region12: #{tpu_custom_call.1} parent=1 // pred_region
      %s28 = ssub.s32 128, 128
      %29 = vsyncadd [#allocation4], %s28
      %s31 = sshll.u32 [#allocation5], 4
      %s32 = int_to_ptr.vmem [resolvable:$true] %s31
      %34 = dma.vmem_to_hbm [thread:$0]  %s32, 128, %s1, [#allocation4]
    $region13: #{tpu_custom_call.1} parent=1 // pred_fallthru
      _
    // Predicated region
    $region14: #{tpu_custom_call.1} parent=1 // pred_check
      _
    $region15: #{tpu_custom_call.1} parent=1 // pred_check_branch
      %36 = sbr.rel (0) target = $region17
    $region16: #{tpu_custom_call.1} parent=1 // pred_region
      %37 = dma.done [#allocation4], 128
    $region17: #{tpu_custom_call.1} parent=1 // pred_fallthru
      _
    %38 = vsyncpa [#allocation3], 1
    %39 = vsyncpa [#allocation4], 1

</llo_original>
